<compile_context>
chip_gen: v5e
topology: v5e:2x2
jax: 0.10.0
libtpu: 0.0.40
codegen_flags: <defaults>
</compile_context>

<pallas_src>
import functools

import jax
import jax.numpy as jnp
from jax.experimental import pallas as pl
from jax.experimental.pallas import tpu as pltpu


def _round_up(n: int, m: int) -> int:
    return ((n + m - 1) // m) * m


def _choose_layout(n: int, itemsize: int, max_block_rows: int, lane_width: int):
    """Pick (cols, block_rows, padded_rows) minimizing padded elements.

    cols is a multiple of 128 (<= lane_width); block_rows is a multiple of the
    dtype's sublane packing and divides padded_rows exactly.
    """
    sublane = 8 * max(1, 4 // itemsize)
    best = None
    max_cols = min(lane_width, _round_up(n, 128))
    for cols in range(max_cols, 127, -128):
        rows = pl.cdiv(n, cols)
        block_rows = min(
            _round_up(max_block_rows, sublane), _round_up(rows, sublane)
        )
        padded_rows = _round_up(rows, block_rows)
        waste = padded_rows * cols - n
        key = (waste, -cols)  # least padding; prefer wider (lane-denser) tiles
        if best is None or key < best[0]:
            best = (key, cols, block_rows, padded_rows)
    _, cols, block_rows, padded_rows = best
    return cols, block_rows, padded_rows


def _gaussian_kernel(x_ref, o_ref, *, mu: float, neg_inv_two_sigma_sq: float):
    # Compute in f32 regardless of storage dtype; cast back on store.
    x = x_ref[...].astype(jnp.float32)
    d = x - mu
    o_ref[...] = jnp.exp(d * d * neg_inv_two_sigma_sq).astype(o_ref.dtype)


def gaussian_kernel(
    x: jax.Array,
    mu: float = 1.0,
    sigma: float = 1.0,
    *,
    max_block_rows: int = 512,
    lane_width: int = 1024,
) -> jax.Array:
    """exp(-(x - mu)^2 / (2 * sigma^2)), elementwise, via a tiled Pallas kernel."""
    orig_shape = x.shape
    n = x.size
    if n == 0:
        return x

    itemsize = jnp.dtype(x.dtype).itemsize
    cols, block_rows, padded_rows = _choose_layout(
        n, itemsize, max_block_rows, lane_width
    )
    total = padded_rows * cols

    flat = x.reshape(-1)
    if total != n:
        flat = jnp.pad(flat, (0, total - n))
    x2d = flat.reshape(padded_rows, cols)

    kernel = functools.partial(
        _gaussian_kernel,
        mu=float(mu),
        neg_inv_two_sigma_sq=-1.0 / (2.0 * float(sigma) * float(sigma)),
    )

    grid = (padded_rows // block_rows,)
    out2d = pl.pallas_call(
        kernel,
        out_shape=jax.ShapeDtypeStruct((padded_rows, cols), x.dtype),
        grid_spec=pltpu.PrefetchScalarGridSpec(
            num_scalar_prefetch=0,
            grid=grid,
            in_specs=[pl.BlockSpec((block_rows, cols), lambda i: (i, 0))],
            out_specs=pl.BlockSpec((block_rows, cols), lambda i: (i, 0)),
        ),
        compiler_params=pltpu.CompilerParams(
            dimension_semantics=("parallel",),
            vmem_limit_bytes=32 * 1024 * 1024,
        ),
    )(x2d)

    return out2d.reshape(-1)[:n].reshape(orig_shape)


if __name__ == "__main__":
    key = jax.random.PRNGKey(0)

    # Small, module-consistent shapes: [batch, left_len, right_len].
    # Covers: 128-multiple sizes (zero-pad path), ragged (pad path),
    # bf16 (f32 internal math), and a forced multi-tile grid (exercises the
    # parallel grid dimension).
    cases = [
        ((2, 8, 128), jnp.float32, 1.0, 1.0, {}),
        ((2, 7, 100), jnp.float32, 0.5, 0.3, {}),
        ((3, 8, 128), jnp.bfloat16, 1.0, 1.0, {}),
        ((2, 64, 256), jnp.float32, 1.0, 2.0, {"max_block_rows": 8}),
    ]

    for i, (shape, dtype, mu, sigma, kwargs) in enumerate(cases):
        k = jax.random.fold_in(key, i)
        x = jax.random.normal(k, shape, dtype=jnp.float32).astype(dtype)

        out = jax.block_until_ready(gaussian_kernel(x, mu=mu, sigma=sigma, **kwargs))

        # Pure-JAX reference (mirrors the PyTorch forward; f32 math).
        ref = jnp.exp(
            -jnp.power(x.astype(jnp.float32) - mu, 2) / (2.0 * sigma ** 2)
        ).astype(dtype)

        assert out.shape == x.shape and out.dtype == x.dtype
        tol = 1e-6 if dtype == jnp.float32 else 1e-2
        assert jnp.allclose(
            out.astype(jnp.float32), ref.astype(jnp.float32), atol=tol, rtol=tol
        ), f"mismatch for case {i} (shape={shape}, dtype={dtype})"

    print("KERNEL_OK")
</pallas_src>

<mosaic_0001>
module attributes {stable_mosaic.version = 11 : i64} {
  func.func @_gaussian_kernel(%arg0: i32, %arg1: memref<8x256xf32, #tpu.memory_space<vmem>>, %arg2: memref<8x256xf32, #tpu.memory_space<vmem>>) attributes {dimension_semantics = [#tpu.dimension_semantics<parallel>], iteration_bounds = array<i64: 1>, scalar_prefetch = 0 : i64, scratch_operands = 0 : i64, tpu.core_type = #tpu.core_type<tc>, window_params = [{transform_indices = @transform_0, window_bounds = array<i64: 8, 256>}, {transform_indices = @transform_1, window_bounds = array<i64: 8, 256>}]} {
    %c0 = arith.constant 0 : index
    %c0_0 = arith.constant 0 : index
    %0 = vector.load %arg1[%c0, %c0_0] : memref<8x256xf32, #tpu.memory_space<vmem>>, vector<8x256xf32>
    %cst = arith.constant 1.000000e+00 : f32
    %1 = vector.broadcast %cst : f32 to vector<8x256xf32>
    %2 = arith.subf %0, %1 : vector<8x256xf32>
    %3 = arith.mulf %2, %2 : vector<8x256xf32>
    %cst_1 = arith.constant -5.000000e-01 : f32
    %4 = vector.broadcast %cst_1 : f32 to vector<8x256xf32>
    %5 = arith.mulf %3, %4 : vector<8x256xf32>
    %6 = math.exp %5 : vector<8x256xf32>
    %c0_2 = arith.constant 0 : index
    %c0_3 = arith.constant 0 : index
    %7 = vector.load %arg2[%c0_2, %c0_3] : memref<8x256xf32, #tpu.memory_space<vmem>>, vector<8x256xf32>
    tpu.vector_store %arg2[%c0_2, %c0_3], %6 {strides = array<i32>} : memref<8x256xf32, #tpu.memory_space<vmem>>, vector<8x256xf32>,
    return
  }
  func.func @transform_0(%arg0: i32) -> (i32, i32) {
    %c0_i32 = arith.constant 0 : i32
    %c0_i32_0 = arith.constant 0 : i32
    return %arg0, %c0_i32 : i32, i32
  }
  func.func @transform_1(%arg0: i32) -> (i32, i32) {
    %c0_i32 = arith.constant 0 : i32
    %c0_i32_0 = arith.constant 0 : i32
    return %arg0, %c0_i32 : i32, i32
  }
}

</mosaic_0001>

<llo_original>
// kernel: tpu_custom_call.1
$region0: #{tpu_custom_call.1}
  #allocation0 [shape = 'u32[]', space=smem, size = 0x4, offset = 0x4, fixed_abs, tag = 'smem constant byte address 0x4 - core index']
  #allocation1 [shape = 'u32[72,128]{1,0:T(1,128)}', space=vmem, size = 0x9000, scoped, tag = 'internal scratch']
  %s0 = inlined_call_operand.hbm [shape: f32[8,256], index: 0, kind: input, shape index: {}]
  %s1 = inlined_call_operand.hbm [shape: f32[8,256], index: 1, kind: output, shape index: {}]
  %s2 = sld [smem:[#allocation0]]
  $region18: #{tpu_custom_call.1} parent=0
    _
  %s4 = ssub.s32 1, %s2
  %s5 = scalar_select 0, %s4, %s2
  $region1: #{tpu_custom_call.1} parent=0
    #allocation2 [shape = 'u8[8192]{0}', space=vmem, size = 0x2000, scoped, tag = 'input window, operand 0, single buffered']
    #allocation3 [shape = 's32[1]{0}', space=sflag, size = 0x4, scoped, tag = 'scoped memory for tpu_custom_call.1']
    #allocation4 [shape = 's32[1]{0}', space=sflag, size = 0x4, scoped, tag = 'scoped memory for tpu_custom_call.1']
    #allocation5 [shape = 'u8[8192]{0}', space=vmem, size = 0x2000, scoped, tag = 'output window, operand 0, single buffered']
    %6 = vsyncpa [#allocation3], 0
    %7 = vsyncpa [#allocation4], 0
    // Predicated region
    $region2: #{tpu_custom_call.1} parent=1 // pred_check
      _
    $region3: #{tpu_custom_call.1} parent=1 // pred_check_branch
      %9 = sbr.rel (0) target = $region5
    $region4: #{tpu_custom_call.1} parent=1 // pred_region
      %11 = vsyncadd [#allocation3], 0
      %s13 = sshll.u32 %s0, 4
      %s14 = int_to_ptr.hbm [resolvable:$true] %s13
      %s15 = sshll.u32 [#allocation2], 4
      %s16 = int_to_ptr.vmem [resolvable:$true] %s15
      %18 = dma.hbm_to_vmem [thread:$0]  %s14, 256, %s16, [#allocation3]
    $region5: #{tpu_custom_call.1} parent=1 // pred_fallthru
      _
    // Predicated region
    $region6: #{tpu_custom_call.1} parent=1 // pred_check
      _
    $region7: #{tpu_custom_call.1} parent=1 // pred_check_branch
      %20 = sbr.rel (0) target = $region9
    $region8: #{tpu_custom_call.1} parent=1 // pred_region
      %22 = dma.done [#allocation3], 256
    $region9: #{tpu_custom_call.1} parent=1 // pred_fallthru
      _
    %v23 = vld [vmem:[#allocation2] sm:$0xff]
    %v24 = vld [vmem:[#allocation2 + $0x8] sm:$0xff]
    %v25 = vsub.f32 %v23, 1.0
    %v26 = vsub.f32 %v24, 1.0
    %v27 = vmul.f32 %v25, %v25
    %v28 = vmul.f32 %v26, %v26
    %v29 = vmul.f32 %v27, -0.5
    %v30 = vmul.f32 %v28, -0.5
    %v31 = vmul.f32 %v29, 1.442695
    %v32 = vpow.pop %v31
    %v33 = vmul.f32 %v30, 1.442695
    %v34 = vpow.pop %v33
    %35 = vst [vmem:[#allocation5] sm:$0xff] %v32
    %36 = vst [vmem:[#allocation5 + $0x8] sm:$0xff] %v34
    // Predicated region
    $region10: #{tpu_custom_call.1} parent=1 // pred_check
      _
    $region11: #{tpu_custom_call.1} parent=1 // pred_check_branch
      %38 = sbr.rel (0) target = $region13
    $region12: #{tpu_custom_call.1} parent=1 // pred_region
      %40 = vsyncadd [#allocation4], 0
      %s42 = sshll.u32 [#allocation5], 4
      %s43 = int_to_ptr.vmem [resolvable:$true] %s42
      %s44 = sshll.u32 %s1, 4
      %s45 = int_to_ptr.hbm [resolvable:$true] %s44
      %47 = dma.vmem_to_hbm [thread:$0]  %s43, 256, %s45, [#allocation4]
    $region13: #{tpu_custom_call.1} parent=1 // pred_fallthru
      _
    // Predicated region
    $region14: #{tpu_custom_call.1} parent=1 // pred_check
      _
    $region15: #{tpu_custom_call.1} parent=1 // pred_check_branch
      %49 = sbr.rel (0) target = $region17
    $region16: #{tpu_custom_call.1} parent=1 // pred_region
      %51 = dma.done [#allocation4], 256
    $region17: #{tpu_custom_call.1} parent=1 // pred_fallthru
      _
    %52 = vsyncpa [#allocation3], 1
    %53 = vsyncpa [#allocation4], 1

</llo_original>
